<compile_context>
chip_gen: v7x
topology: tpu7x:2x2x1
jax: 0.10.0
libtpu: 0.0.40
codegen_flags: <defaults>
</compile_context>

<pallas_src>
import math
from typing import Sequence

import jax
import jax.numpy as jnp
from jax.experimental import pallas as pl
from jax.experimental.pallas import tpu as pltpu

_LANE = 128
_TARGET_BLOCK_BYTES = 4 * 1024 * 1024   # ~4 MiB per input block (16 MiB double-buffered)
_VMEM_LIMIT_BYTES = 32 * 1024 * 1024    # safe on v5e/v6e/v7x


def _signed_threshold(p: float) -> int:
    # P(bits_int32 < t) == p when bits_int32 is uniform over [-2^31, 2^31).
    t = int(round(p * (1 << 32))) - (1 << 31)
    return max(-(1 << 31), min((1 << 31) - 1, t))


def _exclude_runs(exclude: Sequence[int]):
    """Sort + dedup exclude ids and fold consecutive ids into (lo, hi) runs."""
    ids = sorted(set(int(e) for e in exclude))
    runs = []
    for v in ids:
        if runs and v == runs[-1][1] + 1:
            runs[-1][1] = v
        else:
            runs.append([v, v])
    return [(lo, hi) for lo, hi in runs]


def _mask_out_excluded(drop, tok, runs):
    # drop &= (tok not in exclude); consecutive ids use one range check.
    for lo, hi in runs:
        if lo == hi:
            drop = drop & (tok != lo)
        else:
            drop = drop & ((tok < lo) | (tok > hi))
    return drop


def _make_hw_prng_kernel(threshold: int, oov: int, runs):
    def kernel(seed_ref, tok_ref, out_ref):
        # Independent PRNG stream per grid block (and per TensorCore on v7x).
        pltpu.prng_seed(seed_ref[0], pl.program_id(0))
        tok = tok_ref[...]
        bits = pltpu.prng_random_bits(tok.shape)
        if bits.dtype != jnp.int32:
            bits = pltpu.bitcast(bits, jnp.int32)
        drop = bits < jnp.int32(threshold)          # integer-threshold compare
        drop = _mask_out_excluded(drop, tok, runs)
        out_ref[...] = jnp.where(drop, jnp.asarray(oov, dtype=tok.dtype), tok)

    return kernel


def _make_bits_input_kernel(threshold: int, oov: int, runs):
    def kernel(tok_ref, bits_ref, out_ref):
        tok = tok_ref[...]
        drop = bits_ref[...] < jnp.int32(threshold)
        drop = _mask_out_excluded(drop, tok, runs)
        out_ref[...] = jnp.where(drop, jnp.asarray(oov, dtype=tok.dtype), tok)

    return kernel


def _round_up8(x: int) -> int:
    return -(-x // 8) * 8


def _choose_block_rows(rows: int, cols: int) -> int:
    """Pick a sublane-aligned row-block targeting ~4 MiB, with >=2 blocks when rows>=16."""
    target = max(8, ((_TARGET_BLOCK_BYTES // (4 * cols)) // 8) * 8)
    if rows < 16:
        return rows                                   # single full block (tiny input)
    if rows <= target:
        return min(target, _round_up8(-(-rows // 2)))  # >=2 blocks -> both v7x cores busy
    return target


def _run_kernel_2d(tok2d, seed, threshold, oov, runs, donate):
    rows, cols = tok2d.shape
    block_rows = _choose_block_rows(rows, cols)
    grid = (pl.cdiv(rows, block_rows),)
    tile_spec = pl.BlockSpec((block_rows, cols), lambda i: (i, 0))
    out_shape = jax.ShapeDtypeStruct((rows, cols), tok2d.dtype)

    if jax.default_backend() == "tpu":
        kernel = _make_hw_prng_kernel(threshold, oov, runs)
        seed_arr = jnp.asarray([seed], dtype=jnp.int32)
        return pl.pallas_call(
            kernel,
            out_shape=out_shape,
            grid=grid,
            in_specs=[
                pl.BlockSpec(memory_space=pltpu.MemorySpace.SMEM),  # seed scalar
                tile_spec,                                          # token tile
            ],
            out_specs=tile_spec,
            input_output_aliases=({1: 0} if donate else {}),
            compiler_params=pltpu.CompilerParams(
                dimension_semantics=("parallel",),
                vmem_limit_bytes=_VMEM_LIMIT_BYTES),
        )(seed_arr, tok2d)

    # Portable path (CPU / interpret): random bits generated outside the kernel.
    kernel = _make_bits_input_kernel(threshold, oov, runs)
    ubits = jax.random.bits(jax.random.PRNGKey(seed), (rows, cols), dtype=jnp.uint32)
    ibits = jax.lax.bitcast_convert_type(ubits, jnp.int32)
    return pl.pallas_call(
        kernel,
        out_shape=out_shape,
        grid=grid,
        in_specs=[tile_spec, tile_spec],
        out_specs=tile_spec,
        input_output_aliases=({0: 0} if donate else {}),
    )(tok2d, ibits)


def word_dropout(tokens: jax.Array,
                 seed: int,
                 *,
                 p: float,
                 oov: int,
                 exclude: Sequence[int],
                 training: bool = True,
                 donate_tokens: bool = False) -> jax.Array:
    """Pallas equivalent of WordDropout.forward (tokens are int32 here)."""
    if (not training) or p <= 0.0:
        return tokens

    threshold = _signed_threshold(float(p))
    runs = _exclude_runs(exclude)
    orig_shape = tokens.shape
    n = int(math.prod(orig_shape)) if orig_shape else 1
    if n == 0:
        return tokens

    if n % _LANE == 0:
        # Fast path: zero-copy lane-dense reshape; no pad / slice copies.
        tok2d = tokens.reshape(n // _LANE, _LANE)
    elif tokens.ndim >= 2:
        # Ragged path: keep the full trailing dim as the lane dim; no padding needed.
        # TODO(synk): an enormous trailing dim (> ~1M elems) would need row blocking of
        # a different kind; token tensors never get there in practice.
        cols = int(orig_shape[-1])
        tok2d = tokens.reshape(n // cols, cols)
    else:
        # 1-D, not a multiple of 128: single (1, n) block.
        # TODO(synk): a huge ragged 1-D array would need in-kernel tail handling instead.
        tok2d = tokens.reshape(1, n)

    out2d = _run_kernel_2d(tok2d, seed, threshold, oov, runs, donate_tokens)
    return out2d.reshape(orig_shape)


if __name__ == "__main__":
    # Module config (synthetic): p=0.3, oov=100, exclude=[0, 101, 102]
    P = 0.3
    OOV = 100
    EXCLUDE = [0, 101, 102]

    key = jax.random.PRNGKey(0)
    k_tok, k_pos, k_big = jax.random.split(key, 3)

    # ---- Test 1: ragged shape (8, 125) -> exercises the no-pad ragged path ----
    B, S = 8, 125
    tokens = jax.random.randint(k_tok, (B, S), 103, 5000, dtype=jnp.int32)
    special = jax.random.randint(k_pos, (B, S), 0, 10, dtype=jnp.int32)
    tokens = jnp.where(special == 0, 0, tokens)      # PAD
    tokens = tokens.at[:, 0].set(101)                # CLS
    tokens = tokens.at[:, -1].set(102)               # SEP

    out = word_dropout(tokens, seed=1234, p=P, oov=OOV,
                       exclude=EXCLUDE, training=True)
    out = jax.block_until_ready(out)

    tokens_np = jax.device_get(tokens)
    out_np = jax.device_get(out)

    excl_mask = (tokens_np == 0) | (tokens_np == 101) | (tokens_np == 102)
    # Excluded ids must never be replaced.
    assert (out_np[excl_mask] == tokens_np[excl_mask]).all()
    # Every output is either the original token or the OOV id.
    changed = out_np != tokens_np
    assert changed.any() and (out_np[changed] == OOV).all()
    # Some (but not all) eligible tokens dropped at p=0.3.
    assert 0 < int(changed.sum()) < int((~excl_mask).sum())

    # ---- Test 2: lane-aligned shape (64, 512) -> zero-copy fast path, multi-block grid ----
    tokens2 = jax.random.randint(k_big, (64, 512), 103, 5000, dtype=jnp.int32)
    out2 = jax.block_until_ready(
        word_dropout(tokens2, seed=7, p=P, oov=OOV, exclude=EXCLUDE, training=True))
    t2 = jax.device_get(tokens2)
    o2 = jax.device_get(out2)
    ch2 = o2 != t2
    assert (o2[ch2] == OOV).all()
    rate = float(ch2.mean())
    assert 0.2 < rate < 0.4, rate   # no excluded ids present -> drop rate ~= p

    # ---- Eval mode / p=0 is a pass-through ----
    out_eval = word_dropout(tokens, seed=1234, p=P, oov=OOV,
                            exclude=EXCLUDE, training=False)
    assert (jax.device_get(out_eval) == tokens_np).all()

    print("KERNEL_OK")
</pallas_src>

<mosaic_0001>
module attributes {stable_mosaic.version = 11 : i64} {
  func.func @kernel(%arg0: i32, %arg1: memref<8x125xi32, #tpu.memory_space<vmem>>, %arg2: memref<8x125xi32, #tpu.memory_space<vmem>>, %arg3: memref<8x125xi32, #tpu.memory_space<vmem>>) attributes {dimension_semantics = [#tpu.dimension_semantics<arbitrary>], iteration_bounds = array<i64: 1>, scalar_prefetch = 0 : i64, scratch_operands = 0 : i64, tpu.core_type = #tpu.core_type<tc>, window_params = [{transform_indices = @transform_0, window_bounds = array<i64: 8, 125>}, {transform_indices = @transform_1, window_bounds = array<i64: 8, 125>}, {transform_indices = @transform_2, window_bounds = array<i64: 8, 125>}]} {
    %c0 = arith.constant 0 : index
    %c0_0 = arith.constant 0 : index
    %0 = vector.load %arg1[%c0, %c0_0] : memref<8x125xi32, #tpu.memory_space<vmem>>, vector<8x125xi32>
    %c0_1 = arith.constant 0 : index
    %c0_2 = arith.constant 0 : index
    %1 = vector.load %arg2[%c0_1, %c0_2] : memref<8x125xi32, #tpu.memory_space<vmem>>, vector<8x125xi32>
    %c-858993459_i32 = arith.constant -858993459 : i32
    %2 = vector.broadcast %c-858993459_i32 : i32 to vector<8x125xi32>
    %3 = arith.cmpi slt, %1, %2 : vector<8x125xi32>
    %c0_i32 = arith.constant 0 : i32
    %4 = vector.broadcast %c0_i32 : i32 to vector<8x125xi32>
    %5 = arith.cmpi ne, %0, %4 : vector<8x125xi32>
    %6 = arith.andi %3, %5 : vector<8x125xi1>
    %c101_i32 = arith.constant 101 : i32
    %7 = vector.broadcast %c101_i32 : i32 to vector<8x125xi32>
    %8 = arith.cmpi slt, %0, %7 : vector<8x125xi32>
    %c102_i32 = arith.constant 102 : i32
    %9 = vector.broadcast %c102_i32 : i32 to vector<8x125xi32>
    %10 = arith.cmpi sgt, %0, %9 : vector<8x125xi32>
    %11 = arith.ori %8, %10 : vector<8x125xi1>
    %12 = arith.andi %6, %11 : vector<8x125xi1>
    %c100_i32 = arith.constant 100 : i32
    %13 = vector.broadcast %c100_i32 : i32 to vector<8x125xi32>
    %14 = arith.select %12, %13, %0 : vector<8x125xi1>, vector<8x125xi32>
    %c0_3 = arith.constant 0 : index
    %c0_4 = arith.constant 0 : index
    %15 = vector.load %arg3[%c0_3, %c0_4] : memref<8x125xi32, #tpu.memory_space<vmem>>, vector<8x125xi32>
    tpu.vector_store %arg3[%c0_3, %c0_4], %14 {strides = array<i32>} : memref<8x125xi32, #tpu.memory_space<vmem>>, vector<8x125xi32>,
    return
  }
  func.func @transform_0(%arg0: i32) -> (i32, i32) {
    %c0_i32 = arith.constant 0 : i32
    %c0_i32_0 = arith.constant 0 : i32
    return %arg0, %c0_i32 : i32, i32
  }
  func.func @transform_1(%arg0: i32) -> (i32, i32) {
    %c0_i32 = arith.constant 0 : i32
    %c0_i32_0 = arith.constant 0 : i32
    return %arg0, %c0_i32 : i32, i32
  }
  func.func @transform_2(%arg0: i32) -> (i32, i32) {
    %c0_i32 = arith.constant 0 : i32
    %c0_i32_0 = arith.constant 0 : i32
    return %arg0, %c0_i32 : i32, i32
  }
}

</mosaic_0001>

<llo_original>
// kernel: tpu_custom_call.1
$region0: #{tpu_custom_call.1}
  #allocation0 [shape = 'u32[]', space=smem, size = 0x4, offset = 0x4, fixed_abs, tag = 'smem constant byte address 0x4 - core index']
  #allocation1 [shape = 'u32[144,128]{1,0:T(1,128)}', space=vmem, size = 0x12000, scoped, tag = 'internal scratch']
  %s0 = inlined_call_operand.hbm [shape: s32[8,125], index: 0, kind: input, shape index: {}]
  %s1 = inlined_call_operand.hbm [shape: s32[8,125], index: 1, kind: input, shape index: {}]
  %s2 = inlined_call_operand.hbm [shape: s32[8,125], index: 2, kind: output, shape index: {}]
  %s3 = sld [smem:[#allocation0]]
  $region26: #{tpu_custom_call.1} parent=0
    _
  %s5 = ssub.s32 1, %s3
  %s6 = scalar_select 0, %s5, %s3
  $region1: #{tpu_custom_call.1} parent=0
    #allocation2 [shape = 'u8[4096]{0}', space=vmem, size = 0x1000, scoped, tag = 'input window, operand 0, single buffered']
    #allocation3 [shape = 's32[1]{0}', space=sflag, size = 0x4, scoped, tag = 'scoped memory for tpu_custom_call.1']
    #allocation4 [shape = 's32[1]{0}', space=sflag, size = 0x4, scoped, tag = 'scoped memory for tpu_custom_call.1']
    #allocation5 [shape = 'u8[4096]{0}', space=vmem, size = 0x1000, scoped, tag = 'input window, operand 1, single buffered']
    #allocation6 [shape = 's32[1]{0}', space=sflag, size = 0x4, scoped, tag = 'scoped memory for tpu_custom_call.1']
    #allocation7 [shape = 'u8[4096]{0}', space=vmem, size = 0x1000, scoped, tag = 'output window, operand 0, single buffered']
    %7 = vsyncpa [#allocation3], 0
    %8 = vsyncpa [#allocation6], 0
    %9 = vsyncpa [#allocation4], 0
    // Predicated region
    $region2: #{tpu_custom_call.1} parent=1 // pred_check
      _
    $region3: #{tpu_custom_call.1} parent=1 // pred_check_branch
      %11 = sbr.rel (0) target = $region5
    $region4: #{tpu_custom_call.1} parent=1 // pred_region
      %s13 = ssub.s32 128, 128
      %14 = vsyncadd [#allocation3], %s13
      %s16 = sshll.u32 [#allocation2], 4
      %s17 = int_to_ptr.vmem [resolvable:$true] %s16
      %19 = dma.hbm_to_vmem [thread:$0]  %s0, 128, %s17, [#allocation3]
    $region5: #{tpu_custom_call.1} parent=1 // pred_fallthru
      _
    // Predicated region
    $region6: #{tpu_custom_call.1} parent=1 // pred_check
      _
    $region7: #{tpu_custom_call.1} parent=1 // pred_check_branch
      %21 = sbr.rel (0) target = $region9
    $region8: #{tpu_custom_call.1} parent=1 // pred_region
      %s23 = ssub.s32 128, 128
      %24 = vsyncadd [#allocation6], %s23
      %s26 = sshll.u32 [#allocation5], 4
      %s27 = int_to_ptr.vmem [resolvable:$true] %s26
      %29 = dma.hbm_to_vmem [thread:$0]  %s1, 128, %s27, [#allocation6]
    $region9: #{tpu_custom_call.1} parent=1 // pred_fallthru
      _
    // Predicated region
    $region10: #{tpu_custom_call.1} parent=1 // pred_check
      _
    $region11: #{tpu_custom_call.1} parent=1 // pred_check_branch
      %31 = sbr.rel (0) target = $region13
    $region12: #{tpu_custom_call.1} parent=1 // pred_region
      %32 = dma.done [#allocation3], 128
    $region13: #{tpu_custom_call.1} parent=1 // pred_fallthru
      _
    // Predicated region
    $region14: #{tpu_custom_call.1} parent=1 // pred_check
      _
    $region15: #{tpu_custom_call.1} parent=1 // pred_check_branch
      %34 = sbr.rel (0) target = $region17
    $region16: #{tpu_custom_call.1} parent=1 // pred_region
      %35 = dma.done [#allocation6], 128
    $region17: #{tpu_custom_call.1} parent=1 // pred_fallthru
      _
    %v36 = vld [vmem:[#allocation2] sm:$0xff]
    %v37 = vld [vmem:[#allocation5] sm:$0xff]
    %vm38 = vcmp.lt.s32.totalorder %v37, 3435973837
    %vm39 = vcmp.ne.s32.totalorder %v36, 0
    %vm40 = vmand %vm38, %vm39
    %vm41 = vcmp.lt.s32.totalorder %v36, 101
    %vm42 = vcmp.gt.s32.totalorder %v36, 102
    %vm43 = vmor %vm41, %vm42
    %vm44 = vmand %vm40, %vm43
    %v45 = vsel %vm44, 100, %v36
    %vm46 = vcmask 1022976
    %47 = vst.msk [vmem:[#allocation7] sm:$0xff] %vm46, %v45
    // Predicated region
    $region18: #{tpu_custom_call.1} parent=1 // pred_check
      _
    $region19: #{tpu_custom_call.1} parent=1 // pred_check_branch
      %49 = sbr.rel (0) target = $region21
    $region20: #{tpu_custom_call.1} parent=1 // pred_region
      %s51 = ssub.s32 128, 128
      %52 = vsyncadd [#allocation4], %s51
      %s54 = sshll.u32 [#allocation7], 4
      %s55 = int_to_ptr.vmem [resolvable:$true] %s54
      %57 = dma.vmem_to_hbm [thread:$0]  %s55, 128, %s2, [#allocation4]
    $region21: #{tpu_custom_call.1} parent=1 // pred_fallthru
      _
    // Predicated region
    $region22: #{tpu_custom_call.1} parent=1 // pred_check
      _
    $region23: #{tpu_custom_call.1} parent=1 // pred_check_branch
      %59 = sbr.rel (0) target = $region25
    $region24: #{tpu_custom_call.1} parent=1 // pred_region
      %60 = dma.done [#allocation4], 128
    $region25: #{tpu_custom_call.1} parent=1 // pred_fallthru
      _
    %61 = vsyncpa [#allocation3], 1
    %62 = vsyncpa [#allocation6], 1
    %63 = vsyncpa [#allocation4], 1

</llo_original>
